<compile_context>
chip_gen: v5e
topology: v5e:2x2
jax: 0.10.0
libtpu: 0.0.40
codegen_flags: <defaults>
</compile_context>

<pallas_src>
import functools

import jax
import jax.numpy as jnp
from jax.experimental import pallas as pl
from jax.experimental.pallas import tpu as pltpu


def _coupling_kernel(x_ref, w1_ref, b1_ref, w2_ref, b2_ref, w3_ref, b3_ref,
                     y_ref, *, sign):
    """y = x + sign * MLP'(x)   (MLP' already folds the even/odd mask)."""
    x = x_ref[...]
    h = jnp.dot(x, w1_ref[...], preferred_element_type=jnp.float32) + b1_ref[...]
    h = jnp.maximum(h, 0.0)
    h = jnp.dot(h, w2_ref[...], preferred_element_type=jnp.float32) + b2_ref[...]
    h = jnp.maximum(h, 0.0)
    t = jnp.dot(h, w3_ref[...], preferred_element_type=jnp.float32) + b3_ref[...]
    y_ref[...] = x + sign * t


def _const_spec(shape):
    # Weights / biases: one block, constant block index -> DMA'd once per
    # kernel launch and kept resident in VMEM for every grid step.
    return pl.BlockSpec(shape, lambda i: (0, 0))


def _choose_batch_tile(B, D, Hp):
    """Biggest batch tile whose double-buffered streams fit comfortably in VMEM."""
    # Resident weights (single-buffered, constant index_map): w1,w2,w3,b1,b2,b3.
    weight_bytes = 4 * (D * Hp + Hp * Hp + Hp * D + 2 * Hp + D)
    budget = 12 * 1024 * 1024 - weight_bytes       # leave plenty of headroom
    # Per batch row: x + y (both double-buffered) + h/t intermediates in vregs.
    per_row = 4 * (2 * 2 * D + 2 * Hp)
    tb = max(8, min(1024, budget // max(per_row, 1)))
    tb = (tb // 8) * 8
    if B <= tb:
        return B                                   # single block == full dim (allowed)
    return tb


@functools.partial(jax.jit, static_argnames=("sign",))
def _coupling_pallas(x, w1, b1, w2, b2, w3, b3, sign):
    B, D = x.shape
    Hp = w1.shape[1]
    TB = _choose_batch_tile(B, D, Hp)
    n_blocks = pl.cdiv(B, TB)

    flops = 2 * B * (D * Hp + Hp * Hp + Hp * D) + 4 * B * D
    bytes_accessed = 4 * (2 * B * D + D * Hp + Hp * Hp + Hp * D + 2 * Hp + D)

    return pl.pallas_call(
        functools.partial(_coupling_kernel, sign=sign),
        out_shape=jax.ShapeDtypeStruct((B, D), jnp.float32),
        grid=(n_blocks,),
        in_specs=[
            pl.BlockSpec((TB, D), lambda i: (i, 0)),   # x: streamed / pipelined
            _const_spec((D, Hp)),                      # w1 (scattered, padded)
            _const_spec((1, Hp)),                      # b1
            _const_spec((Hp, Hp)),                     # w2
            _const_spec((1, Hp)),                      # b2
            _const_spec((Hp, D)),                      # w3 (scattered, padded)
            _const_spec((1, D)),                       # b3 (zero at kept cols)
        ],
        out_specs=pl.BlockSpec((TB, D), lambda i: (i, 0)),
        compiler_params=pltpu.CompilerParams(
            dimension_semantics=("parallel",),
            vmem_limit_bytes=32 * 1024 * 1024,
        ),
        cost_estimate=pl.CostEstimate(
            flops=flops, transcendentals=0, bytes_accessed=bytes_accessed),
    )(x, w1, b1, w2, b2, w3, b3)


class AdditiveCouplingLayerPallas:
    """JAX/Pallas port of AdditiveCouplingLayer (forward + reverse)."""

    def __init__(self, input_dim, hidden_dim=128, mask_type='even', key=None):
        self.input_dim = input_dim
        self.hidden_dim = hidden_dim
        self.mask_type = mask_type

        # mask: 1 where the feature is kept (fed to the translation net),
        # 0 where the additive update is applied — same semantics as PyTorch.
        if mask_type == 'even':
            keep_idx = list(range(0, input_dim, 2))
            upd_idx = list(range(1, input_dim, 2))
        else:
            keep_idx = list(range(1, input_dim, 2))
            upd_idx = list(range(0, input_dim, 2))
        mask = jnp.zeros((input_dim,), jnp.float32).at[jnp.array(keep_idx)].set(1.0)
        self.mask = mask
        self.masked_dim = len(keep_idx)
        self.unmasked_dim = len(upd_idx)

        # deterministic parameter init (uniform, PyTorch-Linear-like fan_in bound)
        if key is None:
            key = jax.random.PRNGKey(0)
        ks = jax.random.split(key, 6)

        def lin(kw, kb, fan_in, fan_out):
            bound = 1.0 / jnp.sqrt(jnp.float32(fan_in))
            w = jax.random.uniform(kw, (fan_in, fan_out), jnp.float32, -bound, bound)
            b = jax.random.uniform(kb, (1, fan_out), jnp.float32, -bound, bound)
            return w, b

        md, ud, H, D = self.masked_dim, self.unmasked_dim, hidden_dim, input_dim
        self.w1, self.b1 = lin(ks[0], ks[1], md, H)
        self.w2, self.b2 = lin(ks[2], ks[3], H, H)
        self.w3, self.b3 = lin(ks[4], ks[5], H, ud)

        # ---- fold the even/odd split + scatter into zero-padded weights ----
        Hp = max(128, ((H + 127) // 128) * 128)    # lane-dense hidden dim
        self.hidden_dim_padded = Hp

        keep_a = jnp.array(keep_idx, jnp.int32)
        upd_a = jnp.array(upd_idx, jnp.int32)
        s_keep = jnp.zeros((md, D), jnp.float32).at[jnp.arange(md), keep_a].set(1.0)
        s_upd = jnp.zeros((ud, D), jnp.float32).at[jnp.arange(ud), upd_a].set(1.0)

        self.w1_f = jnp.zeros((D, Hp), jnp.float32).at[:, :H].set(s_keep.T @ self.w1)
        self.b1_f = jnp.zeros((1, Hp), jnp.float32).at[:, :H].set(self.b1)
        self.w2_f = jnp.zeros((Hp, Hp), jnp.float32).at[:H, :H].set(self.w2)
        self.b2_f = jnp.zeros((1, Hp), jnp.float32).at[:, :H].set(self.b2)
        self.w3_f = jnp.zeros((Hp, D), jnp.float32).at[:H, :].set(self.w3 @ s_upd)
        self.b3_f = (self.b3 @ s_upd).reshape(1, D)     # zero at kept positions

    def __call__(self, x, reverse=False):
        squeeze_output = (x.ndim == 1)
        if squeeze_output:
            x = x[None, :]
        x = x.astype(jnp.float32)

        sign = -1.0 if reverse else 1.0
        y = _coupling_pallas(x, self.w1_f, self.b1_f, self.w2_f, self.b2_f,
                             self.w3_f, self.b3_f, sign)

        if squeeze_output:
            y = y[0]
        return y


def _reference_forward(layer, x, reverse=False):
    """Pure-JAX reference mirroring the PyTorch forward semantics."""
    if x.ndim == 1:
        x = x[None, :]
        squeeze = True
    else:
        squeeze = False
    mask_b = layer.mask.astype(bool)
    feats = (x * layer.mask[None, :])[:, mask_b]
    h = jnp.maximum(feats @ layer.w1 + layer.b1, 0.0)
    h = jnp.maximum(h @ layer.w2 + layer.b2, 0.0)
    t = h @ layer.w3 + layer.b3
    sign = -1.0 if reverse else 1.0
    y = x.at[:, ~mask_b].set(x[:, ~mask_b] + sign * t)
    if squeeze:
        y = y[0]
    return y


if __name__ == "__main__":
    input_dim, hidden_dim, batch = 16, 32, 8

    key = jax.random.PRNGKey(0)
    k_param, k_x = jax.random.split(key)

    layer = AdditiveCouplingLayerPallas(input_dim, hidden_dim=hidden_dim,
                                        mask_type='even', key=k_param)
    x = jax.random.normal(k_x, (batch, input_dim), jnp.float32)

    y = layer(x, reverse=False)
    jax.block_until_ready(y)

    # sanity checks: matches pure-JAX reference, and reverse inverts forward
    y_ref = _reference_forward(layer, x, reverse=False)
    assert jnp.allclose(y, y_ref, atol=1e-5, rtol=1e-5)
    x_back = layer(y, reverse=True)
    jax.block_until_ready(x_back)
    assert jnp.allclose(x_back, x, atol=1e-5, rtol=1e-5)

    # also exercise the 1-D input path (squeeze semantics of the PyTorch module)
    y1 = layer(x[0], reverse=False)
    jax.block_until_ready(y1)
    assert jnp.allclose(y1, y[0], atol=1e-5, rtol=1e-5)

    # and the odd-mask variant
    layer_odd = AdditiveCouplingLayerPallas(input_dim, hidden_dim=hidden_dim,
                                            mask_type='odd', key=k_param)
    y_odd = layer_odd(x, reverse=False)
    jax.block_until_ready(y_odd)
    assert jnp.allclose(y_odd, _reference_forward(layer_odd, x), atol=1e-5, rtol=1e-5)

    print("KERNEL_OK")
</pallas_src>

<mosaic_0001>
module attributes {stable_mosaic.version = 11 : i64} {
  func.func @_coupling_kernel(%arg0: i32, %arg1: memref<8x16xf32, #tpu.memory_space<vmem>>, %arg2: memref<16x128xf32, #tpu.memory_space<vmem>>, %arg3: memref<1x128xf32, #tpu.memory_space<vmem>>, %arg4: memref<128x128xf32, #tpu.memory_space<vmem>>, %arg5: memref<1x128xf32, #tpu.memory_space<vmem>>, %arg6: memref<128x16xf32, #tpu.memory_space<vmem>>, %arg7: memref<1x16xf32, #tpu.memory_space<vmem>>, %arg8: memref<8x16xf32, #tpu.memory_space<vmem>>) attributes {dimension_semantics = [#tpu.dimension_semantics<parallel>], iteration_bounds = array<i64: 1>, scalar_prefetch = 0 : i64, scratch_operands = 0 : i64, tpu.core_type = #tpu.core_type<tc>, window_params = [{transform_indices = @transform_0, window_bounds = array<i64: 8, 16>}, {pipeline_mode = #tpu.pipeline_mode<synchronous>, transform_indices = @transform_1, window_bounds = array<i64: 16, 128>}, {pipeline_mode = #tpu.pipeline_mode<synchronous>, transform_indices = @transform_2, window_bounds = array<i64: 1, 128>}, {pipeline_mode = #tpu.pipeline_mode<synchronous>, transform_indices = @transform_3, window_bounds = array<i64: 128, 128>}, {pipeline_mode = #tpu.pipeline_mode<synchronous>, transform_indices = @transform_4, window_bounds = array<i64: 1, 128>}, {pipeline_mode = #tpu.pipeline_mode<synchronous>, transform_indices = @transform_5, window_bounds = array<i64: 128, 16>}, {pipeline_mode = #tpu.pipeline_mode<synchronous>, transform_indices = @transform_6, window_bounds = array<i64: 1, 16>}, {transform_indices = @transform_7, window_bounds = array<i64: 8, 16>}]} {
    %c0 = arith.constant 0 : index
    %c0_0 = arith.constant 0 : index
    %0 = vector.load %arg1[%c0, %c0_0] : memref<8x16xf32, #tpu.memory_space<vmem>>, vector<8x16xf32>
    %c0_1 = arith.constant 0 : index
    %c0_2 = arith.constant 0 : index
    %1 = vector.load %arg2[%c0_1, %c0_2] : memref<16x128xf32, #tpu.memory_space<vmem>>, vector<16x128xf32>
    %cst = arith.constant dense<0.000000e+00> : vector<8x128xf32>
    %2 = tpu.matmul %0, %1, %cst {dimension_numbers = #tpu.dot_dimension_numbers<[1], [0], [0], [1], [0, 0, 1, 1], [], []>} : vector<8x16xf32>, vector<16x128xf32>, vector<8x128xf32> -> vector<8x128xf32>
    %c0_3 = arith.constant 0 : index
    %c0_4 = arith.constant 0 : index
    %3 = vector.load %arg3[%c0_3, %c0_4] : memref<1x128xf32, #tpu.memory_space<vmem>>, vector<1x128xf32>
    %4 = vector.broadcast %3 : vector<1x128xf32> to vector<8x128xf32>
    %5 = arith.addf %2, %4 : vector<8x128xf32>
    %cst_5 = arith.constant 0.000000e+00 : f32
    %6 = vector.broadcast %cst_5 : f32 to vector<8x128xf32>
    %7 = arith.maximumf %5, %6 : vector<8x128xf32>
    %c0_6 = arith.constant 0 : index
    %c0_7 = arith.constant 0 : index
    %8 = vector.load %arg4[%c0_6, %c0_7] : memref<128x128xf32, #tpu.memory_space<vmem>>, vector<128x128xf32>
    %cst_8 = arith.constant dense<0.000000e+00> : vector<8x128xf32>
    %9 = tpu.matmul %7, %8, %cst_8 {dimension_numbers = #tpu.dot_dimension_numbers<[1], [0], [0], [1], [0, 0, 1, 1], [], []>} : vector<8x128xf32>, vector<128x128xf32>, vector<8x128xf32> -> vector<8x128xf32>
    %c0_9 = arith.constant 0 : index
    %c0_10 = arith.constant 0 : index
    %10 = vector.load %arg5[%c0_9, %c0_10] : memref<1x128xf32, #tpu.memory_space<vmem>>, vector<1x128xf32>
    %11 = vector.broadcast %10 : vector<1x128xf32> to vector<8x128xf32>
    %12 = arith.addf %9, %11 : vector<8x128xf32>
    %cst_11 = arith.constant 0.000000e+00 : f32
    %13 = vector.broadcast %cst_11 : f32 to vector<8x128xf32>
    %14 = arith.maximumf %12, %13 : vector<8x128xf32>
    %c0_12 = arith.constant 0 : index
    %c0_13 = arith.constant 0 : index
    %15 = vector.load %arg6[%c0_12, %c0_13] : memref<128x16xf32, #tpu.memory_space<vmem>>, vector<128x16xf32>
    %cst_14 = arith.constant dense<0.000000e+00> : vector<8x16xf32>
    %16 = tpu.matmul %14, %15, %cst_14 {dimension_numbers = #tpu.dot_dimension_numbers<[1], [0], [0], [1], [0, 0, 1, 1], [], []>} : vector<8x128xf32>, vector<128x16xf32>, vector<8x16xf32> -> vector<8x16xf32>
    %c0_15 = arith.constant 0 : index
    %c0_16 = arith.constant 0 : index
    %17 = vector.load %arg7[%c0_15, %c0_16] : memref<1x16xf32, #tpu.memory_space<vmem>>, vector<1x16xf32>
    %18 = vector.broadcast %17 : vector<1x16xf32> to vector<8x16xf32>
    %19 = arith.addf %16, %18 : vector<8x16xf32>
    %cst_17 = arith.constant 1.000000e+00 : f32
    %20 = vector.broadcast %cst_17 : f32 to vector<8x16xf32>
    %21 = arith.mulf %20, %19 : vector<8x16xf32>
    %22 = arith.addf %0, %21 : vector<8x16xf32>
    %c0_18 = arith.constant 0 : index
    %c0_19 = arith.constant 0 : index
    %23 = vector.load %arg8[%c0_18, %c0_19] : memref<8x16xf32, #tpu.memory_space<vmem>>, vector<8x16xf32>
    tpu.vector_store %arg8[%c0_18, %c0_19], %22 {strides = array<i32>} : memref<8x16xf32, #tpu.memory_space<vmem>>, vector<8x16xf32>,
    return
  }
  func.func @transform_0(%arg0: i32) -> (i32, i32) {
    %c0_i32 = arith.constant 0 : i32
    %c0_i32_0 = arith.constant 0 : i32
    return %arg0, %c0_i32 : i32, i32
  }
  func.func @transform_1(%arg0: i32) -> (i32, i32) {
    %c0_i32 = arith.constant 0 : i32
    %c0_i32_0 = arith.constant 0 : i32
    %c0_i32_1 = arith.constant 0 : i32
    return %c0_i32, %c0_i32_0 : i32, i32
  }
  func.func @transform_2(%arg0: i32) -> (i32, i32) {
    %c0_i32 = arith.constant 0 : i32
    %c0_i32_0 = arith.constant 0 : i32
    %c0_i32_1 = arith.constant 0 : i32
    return %c0_i32, %c0_i32_0 : i32, i32
  }
  func.func @transform_3(%arg0: i32) -> (i32, i32) {
    %c0_i32 = arith.constant 0 : i32
    %c0_i32_0 = arith.constant 0 : i32
    %c0_i32_1 = arith.constant 0 : i32
    return %c0_i32, %c0_i32_0 : i32, i32
  }
  func.func @transform_4(%arg0: i32) -> (i32, i32) {
    %c0_i32 = arith.constant 0 : i32
    %c0_i32_0 = arith.constant 0 : i32
    %c0_i32_1 = arith.constant 0 : i32
    return %c0_i32, %c0_i32_0 : i32, i32
  }
  func.func @transform_5(%arg0: i32) -> (i32, i32) {
    %c0_i32 = arith.constant 0 : i32
    %c0_i32_0 = arith.constant 0 : i32
    %c0_i32_1 = arith.constant 0 : i32
    return %c0_i32, %c0_i32_0 : i32, i32
  }
  func.func @transform_6(%arg0: i32) -> (i32, i32) {
    %c0_i32 = arith.constant 0 : i32
    %c0_i32_0 = arith.constant 0 : i32
    %c0_i32_1 = arith.constant 0 : i32
    return %c0_i32, %c0_i32_0 : i32, i32
  }
  func.func @transform_7(%arg0: i32) -> (i32, i32) {
    %c0_i32 = arith.constant 0 : i32
    %c0_i32_0 = arith.constant 0 : i32
    return %arg0, %c0_i32 : i32, i32
  }
}

</mosaic_0001>

<llo_original>
// kernel: _coupling_pallas.1
$region0: #{_coupling_pallas.1}
  #allocation0 [shape = 'u32[]', space=smem, size = 0x4, offset = 0x4, fixed_abs, tag = 'smem constant byte address 0x4 - core index']
  #allocation1 [shape = 'u32[72,128]{1,0:T(1,128)}', space=vmem, size = 0x9000, scoped, tag = 'internal scratch']
  %s0 = inlined_call_operand.hbm [shape: f32[8,16], index: 0, kind: input, shape index: {}]
  %s1 = inlined_call_operand.vmem [shape: f32[16,128], index: 1, kind: input, shape index: {}]
  %s2 = inlined_call_operand.vmem [shape: f32[1,128], index: 2, kind: input, shape index: {}]
  %s3 = inlined_call_operand.vmem [shape: f32[128,128], index: 3, kind: input, shape index: {}]
  %s4 = inlined_call_operand.vmem [shape: f32[1,128], index: 4, kind: input, shape index: {}]
  %s5 = inlined_call_operand.vmem [shape: f32[128,16], index: 5, kind: input, shape index: {}]
  %s6 = inlined_call_operand.vmem [shape: f32[1,16], index: 6, kind: input, shape index: {}]
  %s7 = inlined_call_operand.hbm [shape: f32[8,16], index: 7, kind: output, shape index: {}]
  %s8 = sld [smem:[#allocation0]]
  $region42: #{_coupling_pallas.1} parent=0
    _
  %s10 = ssub.s32 1, %s8
  %s11 = scalar_select 0, %s10, %s8
  $region1: #{_coupling_pallas.1} parent=0
    #allocation2 [shape = 'u8[4096]{0}', space=vmem, size = 0x1000, scoped, tag = 'input window, operand 0, single buffered']
    #allocation3 [shape = 's32[1]{0}', space=sflag, size = 0x4, scoped, tag = 'scoped memory for _coupling_pallas.1']
    #allocation4 [shape = 's32[1]{0}', space=sflag, size = 0x4, scoped, tag = 'scoped memory for _coupling_pallas.1']
    #allocation5 [shape = 'u8[4096]{0}', space=vmem, size = 0x1000, scoped, tag = 'output window, operand 0, single buffered']
    %12 = vsyncpa [#allocation3], 0
    %13 = vsyncpa [#allocation4], 0
    // Predicated region
    $region2: #{_coupling_pallas.1} parent=1 // pred_check
      _
    $region3: #{_coupling_pallas.1} parent=1 // pred_check_branch
      %15 = sbr.rel (0) target = $region5
    $region4: #{_coupling_pallas.1} parent=1 // pred_region
      %17 = vsyncadd [#allocation3], 0
      %s19 = sshll.u32 %s0, 4
      %s20 = int_to_ptr.hbm [resolvable:$true] %s19
      %s21 = sshll.u32 [#allocation2], 4
      %s22 = int_to_ptr.vmem [resolvable:$true] %s21
      %24 = dma.hbm_to_vmem [thread:$0]  %s20, 128, %s22, [#allocation3]
    $region5: #{_coupling_pallas.1} parent=1 // pred_fallthru
      _
    // Predicated region
    $region6: #{_coupling_pallas.1} parent=1 // pred_check
      _
    $region7: #{_coupling_pallas.1} parent=1 // pred_check_branch
      %26 = sbr.rel (0) target = $region9
    $region8: #{_coupling_pallas.1} parent=1 // pred_region
      _
    $region9: #{_coupling_pallas.1} parent=1 // pred_fallthru
      _
    // Predicated region
    $region10: #{_coupling_pallas.1} parent=1 // pred_check
      _
    $region11: #{_coupling_pallas.1} parent=1 // pred_check_branch
      %28 = sbr.rel (0) target = $region13
    $region12: #{_coupling_pallas.1} parent=1 // pred_region
      _
    $region13: #{_coupling_pallas.1} parent=1 // pred_fallthru
      _
    // Predicated region
    $region14: #{_coupling_pallas.1} parent=1 // pred_check
      _
    $region15: #{_coupling_pallas.1} parent=1 // pred_check_branch
      %30 = sbr.rel (0) target = $region17
    $region16: #{_coupling_pallas.1} parent=1 // pred_region
      _
    $region17: #{_coupling_pallas.1} parent=1 // pred_fallthru
      _
    // Predicated region
    $region18: #{_coupling_pallas.1} parent=1 // pred_check
      _
    $region19: #{_coupling_pallas.1} parent=1 // pred_check_branch
      %32 = sbr.rel (0) target = $region21
    $region20: #{_coupling_pallas.1} parent=1 // pred_region
      _
    $region21: #{_coupling_pallas.1} parent=1 // pred_fallthru
      _
    // Predicated region
    $region22: #{_coupling_pallas.1} parent=1 // pred_check
      _
    $region23: #{_coupling_pallas.1} parent=1 // pred_check_branch
      %34 = sbr.rel (0) target = $region25
    $region24: #{_coupling_pallas.1} parent=1 // pred_region
      _
    $region25: #{_coupling_pallas.1} parent=1 // pred_fallthru
      _
    // Predicated region
    $region26: #{_coupling_pallas.1} parent=1 // pred_check
      _
    $region27: #{_coupling_pallas.1} parent=1 // pred_check_branch
      %36 = sbr.rel (0) target = $region29
    $region28: #{_coupling_pallas.1} parent=1 // pred_region
      _
    $region29: #{_coupling_pallas.1} parent=1 // pred_fallthru
      _
    // Predicated region
    $region30: #{_coupling_pallas.1} parent=1 // pred_check
      _
    $region31: #{_coupling_pallas.1} parent=1 // pred_check_branch
      %38 = sbr.rel (0) target = $region33
    $region32: #{_coupling_pallas.1} parent=1 // pred_region
      %40 = dma.done [#allocation3], 128
    $region33: #{_coupling_pallas.1} parent=1 // pred_fallthru
      _
    %v41 = vld [vmem:[#allocation2] sm:$0xff]
    %v42 = vld [vmem:[%s1] sm:$0xff]
    %v43 = vld [vmem:[%s1 + $0x8] sm:$0xff]
    %v44 = vld [vmem:[%s2] sm:$0x1]
    %v46 = vperm.slane %v44, 0
    %vm48 = vcmask 130048
    %v50 = vsel %vm48, %v41, 0
    %52 = vmatpush.msra.mxu0 0.0
    %53 = vmatpush.msra.mxu0 0.0
    %54 = vmatpush.msra.mxu0 0.0
    %55 = vmatpush.msra.mxu0 0.0
    %56 = vmatpush.msra.mxu0 0.0
    %57 = vmatpush.msra.mxu0 0.0
    %58 = vmatpush.msra.mxu0 0.0
    %59 = vmatpush.msra.mxu0 0.0
    %60 = vmatpush.msra.mxu0 0.0
    %61 = vmatpush.msra.mxu0 0.0
    %62 = vmatpush.msra.mxu0 0.0
    %63 = vmatpush.msra.mxu0 0.0
    %64 = vmatpush.msra.mxu0 0.0
    %65 = vmatpush.msra.mxu0 0.0
    %66 = vmatpush.msra.mxu0 %v43
    %67 = vmatpush.msra.mxu0 %v42
    %68 = vmatmul.f32.gmra.mxu0 %v50
    %v69 = vpop.f32.mrf.mxu0
    %v70 = vadd.f32 %v46, %v69
    %71 = vdwg.mxu0
    %v72 = vmax.f32 %v70, 0.0
    %v73 = vld [vmem:[%s3] sm:$0xff]
    %v74 = vld [vmem:[%s3 + $0x8] sm:$0xff]
    %v75 = vld [vmem:[%s3 + $0x10] sm:$0xff]
    %v76 = vld [vmem:[%s3 + $0x18] sm:$0xff]
    %v77 = vld [vmem:[%s3 + $0x20] sm:$0xff]
    %v78 = vld [vmem:[%s3 + $0x28] sm:$0xff]
    %v79 = vld [vmem:[%s3 + $0x30] sm:$0xff]
    %v80 = vld [vmem:[%s3 + $0x38] sm:$0xff]
    %v81 = vld [vmem:[%s3 + $0x40] sm:$0xff]
    %v82 = vld [vmem:[%s3 + $0x48] sm:$0xff]
    %v83 = vld [vmem:[%s3 + $0x50] sm:$0xff]
    %v84 = vld [vmem:[%s3 + $0x58] sm:$0xff]
    %v85 = vld [vmem:[%s3 + $0x60] sm:$0xff]
    %v86 = vld [vmem:[%s3 + $0x68] sm:$0xff]
    %v87 = vld [vmem:[%s3 + $0x70] sm:$0xff]
    %v88 = vld [vmem:[%s3 + $0x78] sm:$0xff]
    %v89 = vld [vmem:[%s4] sm:$0x1]
    %v91 = vperm.slane %v89, 0
    %93 = vmatpush.msra.mxu0 %v88
    %94 = vmatpush.msra.mxu0 %v87
    %95 = vmatpush.msra.mxu0 %v86
    %96 = vmatpush.msra.mxu0 %v85
    %97 = vmatpush.msra.mxu0 %v84
    %98 = vmatpush.msra.mxu0 %v83
    %99 = vmatpush.msra.mxu0 %v82
    %100 = vmatpush.msra.mxu0 %v81
    %101 = vmatpush.msra.mxu0 %v80
    %102 = vmatpush.msra.mxu0 %v79
    %103 = vmatpush.msra.mxu0 %v78
    %104 = vmatpush.msra.mxu0 %v77
    %105 = vmatpush.msra.mxu0 %v76
    %106 = vmatpush.msra.mxu0 %v75
    %107 = vmatpush.msra.mxu0 %v74
    %108 = vmatpush.msra.mxu0 %v73
    %109 = vmatmul.f32.gmra.mxu0 %v72
    %v110 = vpop.f32.mrf.mxu0
    %v111 = vadd.f32 %v91, %v110
    %112 = vdwg.mxu0
    %v113 = vmax.f32 %v111, 0.0
    %v114 = vld [vmem:[%s5] sm:$0xff]
    %v115 = vld [vmem:[%s5 + $0x8] sm:$0xff]
    %v116 = vld [vmem:[%s5 + $0x10] sm:$0xff]
    %v117 = vld [vmem:[%s5 + $0x18] sm:$0xff]
    %v118 = vld [vmem:[%s5 + $0x20] sm:$0xff]
    %v119 = vld [vmem:[%s5 + $0x28] sm:$0xff]
    %v120 = vld [vmem:[%s5 + $0x30] sm:$0xff]
    %v121 = vld [vmem:[%s5 + $0x38] sm:$0xff]
    %v122 = vld [vmem:[%s5 + $0x40] sm:$0xff]
    %v123 = vld [vmem:[%s5 + $0x48] sm:$0xff]
    %v124 = vld [vmem:[%s5 + $0x50] sm:$0xff]
    %v125 = vld [vmem:[%s5 + $0x58] sm:$0xff]
    %v126 = vld [vmem:[%s5 + $0x60] sm:$0xff]
    %v127 = vld [vmem:[%s5 + $0x68] sm:$0xff]
    %v128 = vld [vmem:[%s5 + $0x70] sm:$0xff]
    %v129 = vld [vmem:[%s5 + $0x78] sm:$0xff]
    %v130 = vld [vmem:[%s6] sm:$0x1]
    %v132 = vperm.slane %v130, 0
    %134 = vmatpush.msra.mxu0 %v129
    %135 = vmatpush.msra.mxu0 %v128
    %136 = vmatpush.msra.mxu0 %v127
    %137 = vmatpush.msra.mxu0 %v126
    %138 = vmatpush.msra.mxu0 %v125
    %139 = vmatpush.msra.mxu0 %v124
    %140 = vmatpush.msra.mxu0 %v123
    %141 = vmatpush.msra.mxu0 %v122
    %142 = vmatpush.msra.mxu0 %v121
    %143 = vmatpush.msra.mxu0 %v120
    %144 = vmatpush.msra.mxu0 %v119
    %145 = vmatpush.msra.mxu0 %v118
    %146 = vmatpush.msra.mxu0 %v117
    %147 = vmatpush.msra.mxu0 %v116
    %148 = vmatpush.msra.mxu0 %v115
    %149 = vmatpush.msra.mxu0 %v114
    %150 = vmatmul.f32.gmra.mxu0 %v113
    %v151 = vpop.f32.mrf.mxu0
    %v152 = vadd.f32 %v132, %v151
    %153 = vdwg.mxu0
    %v154 = vadd.f32 %v41, %v152
    %155 = vst.msk [vmem:[#allocation5] sm:$0xff] %vm48, %v154
    // Predicated region
    $region34: #{_coupling_pallas.1} parent=1 // pred_check
      _
    $region35: #{_coupling_pallas.1} parent=1 // pred_check_branch
      %157 = sbr.rel (0) target = $region37
    $region36: #{_coupling_pallas.1} parent=1 // pred_region
      %159 = vsyncadd [#allocation4], 0
      %s161 = sshll.u32 [#allocation5], 4
      %s162 = int_to_ptr.vmem [resolvable:$true] %s161
      %s163 = sshll.u32 %s7, 4
      %s164 = int_to_ptr.hbm [resolvable:$true] %s163
      %166 = dma.vmem_to_hbm [thread:$0]  %s162, 128, %s164, [#allocation4]
    $region37: #{_coupling_pallas.1} parent=1 // pred_fallthru
      _
    // Predicated region
    $region38: #{_coupling_pallas.1} parent=1 // pred_check
      _
    $region39: #{_coupling_pallas.1} parent=1 // pred_check_branch
      %168 = sbr.rel (0) target = $region41
    $region40: #{_coupling_pallas.1} parent=1 // pred_region
      %170 = dma.done [#allocation4], 128
    $region41: #{_coupling_pallas.1} parent=1 // pred_fallthru
      _
    %171 = vsyncpa [#allocation3], 1
    %172 = vsyncpa [#allocation4], 1

</llo_original>
